<compile_context>
chip_gen: v6e
topology: v6e:2x2x1
jax: 0.10.0
libtpu: 0.0.40
codegen_flags: <defaults>
</compile_context>

<pallas_src>
import functools

import jax
import jax.numpy as jnp
from jax.experimental import pallas as pl
from jax.experimental.pallas import tpu as pltpu

EPS = 1e-5  # PyTorch BatchNorm2d default eps


# ----------------------------------------------------------------------------
# In-kernel helpers
# ----------------------------------------------------------------------------
def _rotate_left(x, shift):
    """result[:, p] = x[:, (p + shift) % M].

    Explicit lane rotation via two static slices + concat (unambiguous
    semantics; pltpu.roll would move this onto the XLU slot).
    """
    m = x.shape[-1]
    s = shift % m
    if s == 0:
        return x
    return jnp.concatenate([x[:, s:], x[:, :s]], axis=-1)


# ----------------------------------------------------------------------------
# Fused Block kernel
# ----------------------------------------------------------------------------
def resnet_block_kernel(p1_ref, xs_ref, w1_ref, w2_ref, wsc_ref, mask_ref,
                        gamma_ref, beta_ref, o_ref, *, ow1, has_sc_conv):
    """Whole residual block in one program.

    p1_ref    : (9*Cin, M)  bf16  conv1 im2col patches, M = B*OH*OW (lane-dense)
    xs_ref    : (Cin,  M)   bf16  shortcut-conv input   (conv shortcut)
                (Cout, M)   f32   identity shortcut input
    w1_ref    : (Cout, 9*Cin)  bf16
    w2_ref    : (Cout, 9*Cout) bf16
    wsc_ref   : (Cout, Cin)    bf16  (unused when has_sc_conv=False)
    mask_ref  : (9, 1, M) f32   per-tap zero-padding border masks for conv2
    gamma_ref : (3, Cout, 1) f32   BN gammas: [bn1, bn2, bn_sc]
    beta_ref  : (3, Cout, 1) f32   BN betas
    o_ref     : (Cout, M) f32
    """
    m = o_ref.shape[1]
    inv_m = 1.0 / m

    def bn_relu(z, i):
        # Training-mode BatchNorm2d over the N*H*W (lane) axis, one pass:
        # sum + sum-of-squares, folded into a single per-channel scale/shift.
        s1 = jnp.sum(z, axis=1, keepdims=True)
        s2 = jnp.sum(z * z, axis=1, keepdims=True)
        mean = s1 * inv_m
        var = s2 * inv_m - mean * mean                 # biased variance
        scale = gamma_ref[i] * jax.lax.rsqrt(var + EPS)
        shift = beta_ref[i] - mean * scale
        return jnp.maximum(z * scale + shift, 0.0)

    # ---- conv1 (3x3, stride s, pad 1) + BN1 + ReLU --------------------------
    z1 = jnp.dot(w1_ref[...], p1_ref[...], preferred_element_type=jnp.float32)
    a1 = bn_relu(z1, 0)                                # (Cout, M) f32

    # ---- conv2 (3x3, stride 1, pad 1): im2col built in-kernel ---------------
    # Each tap = lane rotation of a1 + border mask (implements zero padding and
    # kills wrap-around garbage); 9 slabs concatenated -> one K=9*Cout MXU dot.
    slabs = []
    for di in range(3):
        for dj in range(3):
            t = di * 3 + dj
            off = (di - 1) * ow1 + (dj - 1)
            shifted = _rotate_left(a1, off)
            slabs.append(shifted * mask_ref[t])
    p2 = jnp.concatenate(slabs, axis=0).astype(jnp.bfloat16)   # (9*Cout, M)
    z2 = jnp.dot(w2_ref[...], p2, preferred_element_type=jnp.float32)
    a2 = bn_relu(z2, 1)

    # ---- shortcut ------------------------------------------------------------
    if has_sc_conv:
        zs = jnp.dot(wsc_ref[...], xs_ref[...],
                     preferred_element_type=jnp.float32)
        sc = bn_relu(zs, 2)
    else:
        sc = xs_ref[...]                               # identity shortcut

    # ---- residual add + final ReLU (lane-dense full-vreg store) -------------
    o_ref[...] = jnp.maximum(a2 + sc, 0.0)


# ----------------------------------------------------------------------------
# Wrapper: layout plumbing (plain JAX) + the single pallas_call
# ----------------------------------------------------------------------------
def _flatten_cm(x_nchw):
    """(B, C, H, W) -> (C, B*H*W): channels on sublanes, pixels lane-dense."""
    b, c, h, w = x_nchw.shape
    return jnp.transpose(x_nchw, (1, 0, 2, 3)).reshape(c, b * h * w)


def block_forward(x_nchw, params, *, stride):
    w1, w2 = params["w1"], params["w2"]
    cout, cin, _, _ = w1.shape
    b, _, h, w = x_nchw.shape
    has_sc_conv = (stride != 1) or (cin != cout)

    oh = (h + 2 - 3) // stride + 1
    ow = (w + 2 - 3) // stride + 1
    m = b * oh * ow

    # conv1 im2col (handles arbitrary stride outside the kernel; tiny traffic).
    xpad = jnp.pad(x_nchw, ((0, 0), (0, 0), (1, 1), (1, 1)))
    slabs = []
    for di in range(3):
        for dj in range(3):
            slabs.append(
                xpad[:, :, di:di + stride * oh:stride, dj:dj + stride * ow:stride])
    p1 = jnp.stack(slabs, 0)                                  # (9, B, Cin, OH, OW)
    p1 = jnp.transpose(p1, (0, 2, 1, 3, 4)).reshape(9 * cin, m)
    p1 = p1.astype(jnp.bfloat16)

    # Weights in GEMM layout matching the (tap, cin) patch ordering.
    w1m = jnp.transpose(w1, (0, 2, 3, 1)).reshape(cout, 9 * cin).astype(jnp.bfloat16)
    w2m = jnp.transpose(w2, (0, 2, 3, 1)).reshape(cout, 9 * cout).astype(jnp.bfloat16)

    # Per-tap border masks for conv2's in-kernel im2col (zero padding).
    ohi = jnp.arange(oh).reshape(oh, 1)
    owi = jnp.arange(ow).reshape(1, ow)
    masks = []
    for di in range(3):
        for dj in range(3):
            valid = ((ohi + di - 1 >= 0) & (ohi + di - 1 < oh) &
                     (owi + dj - 1 >= 0) & (owi + dj - 1 < ow))
            masks.append(jnp.broadcast_to(valid, (b, oh, ow)).reshape(1, m))
    mask = jnp.stack(masks, 0).astype(jnp.float32)            # (9, 1, M)

    # Shortcut operand.
    if has_sc_conv:
        xs = _flatten_cm(x_nchw[:, :, ::stride, ::stride]).astype(jnp.bfloat16)
        wscm = params["wsc"].reshape(cout, cin).astype(jnp.bfloat16)
        gsc, bsc = params["gsc"], params["bsc"]
    else:
        xs = _flatten_cm(x_nchw).astype(jnp.float32)          # identity
        wscm = jnp.zeros((cout, cin), jnp.bfloat16)           # unused
        gsc = jnp.ones((cout,), jnp.float32)
        bsc = jnp.zeros((cout,), jnp.float32)

    gammas = jnp.stack([params["g1"], params["g2"], gsc], 0).reshape(3, cout, 1)
    betas = jnp.stack([params["b1"], params["b2"], bsc], 0).reshape(3, cout, 1)

    # NOTE: BatchNorm running_mean/running_var buffer updates (a training-time
    # side effect) are not produced; they do not affect the forward output.
    vmem = pl.BlockSpec(memory_space=pltpu.MemorySpace.VMEM)
    out_cm = pl.pallas_call(
        functools.partial(resnet_block_kernel, ow1=ow, has_sc_conv=has_sc_conv),
        out_shape=jax.ShapeDtypeStruct((cout, m), jnp.float32),
        in_specs=[vmem] * 8,
        out_specs=vmem,
    )(p1, xs, w1m, w2m, wscm, mask, gammas, betas)

    # (Cout, B*OH*OW) -> NCHW, matching the PyTorch module's output layout.
    return jnp.transpose(out_cm.reshape(cout, b, oh, ow), (1, 0, 2, 3))


# ----------------------------------------------------------------------------
# Deterministic synthetic parameters (shapes from Block.__init__)
# ----------------------------------------------------------------------------
def init_block_params(key, cin, cout, stride):
    has_sc = (stride != 1) or (cin != cout)
    ks = jax.random.split(key, 9)

    def conv_w(k, co, ci, kh, kw):
        fan_in = ci * kh * kw
        return (jax.random.normal(k, (co, ci, kh, kw), jnp.float32)
                / jnp.sqrt(jnp.float32(fan_in)))

    p = {
        "w1": conv_w(ks[0], cout, cin, 3, 3),
        "g1": 1.0 + 0.1 * jax.random.normal(ks[1], (cout,), jnp.float32),
        "b1": 0.1 * jax.random.normal(ks[2], (cout,), jnp.float32),
        "w2": conv_w(ks[3], cout, cout, 3, 3),
        "g2": 1.0 + 0.1 * jax.random.normal(ks[4], (cout,), jnp.float32),
        "b2": 0.1 * jax.random.normal(ks[5], (cout,), jnp.float32),
    }
    if has_sc:
        p["wsc"] = conv_w(ks[6], cout, cin, 1, 1)
        p["gsc"] = 1.0 + 0.1 * jax.random.normal(ks[7], (cout,), jnp.float32)
        p["bsc"] = 0.1 * jax.random.normal(ks[8], (cout,), jnp.float32)
    return p


if __name__ == "__main__":
    key = jax.random.PRNGKey(0)
    kx, kp, kp2 = jax.random.split(key, 3)

    # Downsampling block: stride=2, 4->8 channels => conv shortcut path.
    # M = B*OH*OW = 2*8*8 = 128 -> exactly lane-dense.
    x = jax.random.normal(kx, (2, 4, 16, 16), jnp.float32)     # NCHW
    params = init_block_params(kp, 4, 8, stride=2)
    fwd = jax.jit(functools.partial(block_forward, stride=2))
    out = jax.block_until_ready(fwd(x, params))
    assert out.shape == (2, 8, 8, 8), out.shape
    assert bool(jnp.all(jnp.isfinite(out)))

    # Identity-shortcut block: stride=1, Cin == Cout.
    x2 = jax.random.normal(kx, (2, 8, 8, 8), jnp.float32)
    params2 = init_block_params(kp2, 8, 8, stride=1)
    fwd2 = jax.jit(functools.partial(block_forward, stride=1))
    out2 = jax.block_until_ready(fwd2(x2, params2))
    assert out2.shape == (2, 8, 8, 8), out2.shape
    assert bool(jnp.all(jnp.isfinite(out2)))

    print("KERNEL_OK")
</pallas_src>

<mosaic_0001>
module attributes {stable_mosaic.version = 11 : i64} {
  func.func @resnet_block_kernel(%arg0: memref<36x128xbf16, #tpu.memory_space<vmem>>, %arg1: memref<4x128xbf16, #tpu.memory_space<vmem>>, %arg2: memref<8x36xbf16, #tpu.memory_space<vmem>>, %arg3: memref<8x72xbf16, #tpu.memory_space<vmem>>, %arg4: memref<8x4xbf16, #tpu.memory_space<vmem>>, %arg5: memref<9x1x128xf32, #tpu.memory_space<vmem>>, %arg6: memref<3x8x1xf32, #tpu.memory_space<vmem>>, %arg7: memref<3x8x1xf32, #tpu.memory_space<vmem>>, %arg8: memref<8x128xf32, #tpu.memory_space<vmem>>) attributes {dimension_semantics = [], scalar_prefetch = 0 : i64, scratch_operands = 0 : i64, tpu.core_type = #tpu.core_type<tc>} {
    %c0 = arith.constant 0 : index
    %c0_0 = arith.constant 0 : index
    %0 = vector.load %arg2[%c0, %c0_0] : memref<8x36xbf16, #tpu.memory_space<vmem>>, vector<8x36xbf16>
    %c0_1 = arith.constant 0 : index
    %c0_2 = arith.constant 0 : index
    %1 = vector.load %arg0[%c0_1, %c0_2] : memref<36x128xbf16, #tpu.memory_space<vmem>>, vector<36x128xbf16>
    %cst = arith.constant dense<0.000000e+00> : vector<8x128xf32>
    %2 = tpu.matmul %0, %1, %cst {dimension_numbers = #tpu.dot_dimension_numbers<[1], [0], [0], [1], [0, 0, 1, 1], [], []>} : vector<8x36xbf16>, vector<36x128xbf16>, vector<8x128xf32> -> vector<8x128xf32>
    %cst_3 = arith.constant dense<0.000000e+00> : vector<8xf32>
    %3 = vector.multi_reduction <add>, %2, %cst_3 [1] : vector<8x128xf32> to vector<8xf32>
    %4 = vector.shape_cast %3 : vector<8xf32> to vector<8x1xf32>
    %5 = arith.mulf %2, %2 : vector<8x128xf32>
    %cst_4 = arith.constant dense<0.000000e+00> : vector<8xf32>
    %6 = vector.multi_reduction <add>, %5, %cst_4 [1] : vector<8x128xf32> to vector<8xf32>
    %7 = vector.shape_cast %6 : vector<8xf32> to vector<8x1xf32>
    %cst_5 = arith.constant 7.812500e-03 : f32
    %8 = vector.broadcast %cst_5 : f32 to vector<8x1xf32>
    %9 = arith.mulf %4, %8 : vector<8x1xf32>
    %cst_6 = arith.constant 7.812500e-03 : f32
    %10 = vector.broadcast %cst_6 : f32 to vector<8x1xf32>
    %11 = arith.mulf %7, %10 : vector<8x1xf32>
    %12 = arith.mulf %9, %9 : vector<8x1xf32>
    %13 = arith.subf %11, %12 : vector<8x1xf32>
    %c0_7 = arith.constant 0 : index
    %c0_8 = arith.constant 0 : index
    %c0_9 = arith.constant 0 : index
    %14 = vector.load %arg6[%c0_7, %c0_8, %c0_9] : memref<3x8x1xf32, #tpu.memory_space<vmem>>, vector<1x8x1xf32>
    %15 = vector.shape_cast %14 : vector<1x8x1xf32> to vector<8x1xf32>
    %cst_10 = arith.constant 9.99999974E-6 : f32
    %16 = vector.broadcast %cst_10 : f32 to vector<8x1xf32>
    %17 = arith.addf %13, %16 : vector<8x1xf32>
    %18 = math.rsqrt %17 : vector<8x1xf32>
    %19 = arith.mulf %15, %18 : vector<8x1xf32>
    %c0_11 = arith.constant 0 : index
    %c0_12 = arith.constant 0 : index
    %c0_13 = arith.constant 0 : index
    %20 = vector.load %arg7[%c0_11, %c0_12, %c0_13] : memref<3x8x1xf32, #tpu.memory_space<vmem>>, vector<1x8x1xf32>
    %21 = vector.shape_cast %20 : vector<1x8x1xf32> to vector<8x1xf32>
    %22 = arith.mulf %9, %19 : vector<8x1xf32>
    %23 = arith.subf %21, %22 : vector<8x1xf32>
    %24 = vector.broadcast %19 : vector<8x1xf32> to vector<8x128xf32>
    %25 = arith.mulf %2, %24 : vector<8x128xf32>
    %26 = vector.broadcast %23 : vector<8x1xf32> to vector<8x128xf32>
    %27 = arith.addf %25, %26 : vector<8x128xf32>
    %cst_14 = arith.constant 0.000000e+00 : f32
    %28 = vector.broadcast %cst_14 : f32 to vector<8x128xf32>
    %29 = arith.maximumf %27, %28 : vector<8x128xf32>
    %30 = vector.extract_strided_slice %29 {offsets = [0, 119], sizes = [8, 9], strides = [1, 1]} : vector<8x128xf32> to vector<8x9xf32>
    %31 = vector.extract_strided_slice %29 {offsets = [0, 0], sizes = [8, 119], strides = [1, 1]} : vector<8x128xf32> to vector<8x119xf32>
    %32 = tpu.concatenate %30, %31 in 1 : vector<8x9xf32>, vector<8x119xf32> -> vector<8x128xf32>
    %c0_15 = arith.constant 0 : index
    %c0_16 = arith.constant 0 : index
    %c0_17 = arith.constant 0 : index
    %33 = vector.load %arg5[%c0_15, %c0_16, %c0_17] : memref<9x1x128xf32, #tpu.memory_space<vmem>>, vector<1x1x128xf32>
    %34 = vector.shape_cast %33 : vector<1x1x128xf32> to vector<1x128xf32>
    %35 = vector.broadcast %34 : vector<1x128xf32> to vector<8x128xf32>
    %36 = arith.mulf %32, %35 : vector<8x128xf32>
    %37 = vector.extract_strided_slice %29 {offsets = [0, 120], sizes = [8, 8], strides = [1, 1]} : vector<8x128xf32> to vector<8x8xf32>
    %38 = vector.extract_strided_slice %29 {offsets = [0, 0], sizes = [8, 120], strides = [1, 1]} : vector<8x128xf32> to vector<8x120xf32>
    %39 = tpu.concatenate %37, %38 in 1 : vector<8x8xf32>, vector<8x120xf32> -> vector<8x128xf32>
    %c1 = arith.constant 1 : index
    %c0_18 = arith.constant 0 : index
    %c0_19 = arith.constant 0 : index
    %40 = vector.load %arg5[%c1, %c0_18, %c0_19] : memref<9x1x128xf32, #tpu.memory_space<vmem>>, vector<1x1x128xf32>
    %41 = vector.shape_cast %40 : vector<1x1x128xf32> to vector<1x128xf32>
    %42 = vector.broadcast %41 : vector<1x128xf32> to vector<8x128xf32>
    %43 = arith.mulf %39, %42 : vector<8x128xf32>
    %44 = vector.extract_strided_slice %29 {offsets = [0, 121], sizes = [8, 7], strides = [1, 1]} : vector<8x128xf32> to vector<8x7xf32>
    %45 = vector.extract_strided_slice %29 {offsets = [0, 0], sizes = [8, 121], strides = [1, 1]} : vector<8x128xf32> to vector<8x121xf32>
    %46 = tpu.concatenate %44, %45 in 1 : vector<8x7xf32>, vector<8x121xf32> -> vector<8x128xf32>
    %c2 = arith.constant 2 : index
    %c0_20 = arith.constant 0 : index
    %c0_21 = arith.constant 0 : index
    %47 = vector.load %arg5[%c2, %c0_20, %c0_21] : memref<9x1x128xf32, #tpu.memory_space<vmem>>, vector<1x1x128xf32>
    %48 = vector.shape_cast %47 : vector<1x1x128xf32> to vector<1x128xf32>
    %49 = vector.broadcast %48 : vector<1x128xf32> to vector<8x128xf32>
    %50 = arith.mulf %46, %49 : vector<8x128xf32>
    %51 = vector.extract_strided_slice %29 {offsets = [0, 127], sizes = [8, 1], strides = [1, 1]} : vector<8x128xf32> to vector<8x1xf32>
    %52 = vector.extract_strided_slice %29 {offsets = [0, 0], sizes = [8, 127], strides = [1, 1]} : vector<8x128xf32> to vector<8x127xf32>
    %53 = tpu.concatenate %51, %52 in 1 : vector<8x1xf32>, vector<8x127xf32> -> vector<8x128xf32>
    %c3 = arith.constant 3 : index
    %c0_22 = arith.constant 0 : index
    %c0_23 = arith.constant 0 : index
    %54 = vector.load %arg5[%c3, %c0_22, %c0_23] : memref<9x1x128xf32, #tpu.memory_space<vmem>>, vector<1x1x128xf32>
    %55 = vector.shape_cast %54 : vector<1x1x128xf32> to vector<1x128xf32>
    %56 = vector.broadcast %55 : vector<1x128xf32> to vector<8x128xf32>
    %57 = arith.mulf %53, %56 : vector<8x128xf32>
    %c4 = arith.constant 4 : index
    %c0_24 = arith.constant 0 : index
    %c0_25 = arith.constant 0 : index
    %58 = vector.load %arg5[%c4, %c0_24, %c0_25] : memref<9x1x128xf32, #tpu.memory_space<vmem>>, vector<1x1x128xf32>
    %59 = vector.shape_cast %58 : vector<1x1x128xf32> to vector<1x128xf32>
    %60 = vector.broadcast %59 : vector<1x128xf32> to vector<8x128xf32>
    %61 = arith.mulf %29, %60 : vector<8x128xf32>
    %62 = vector.extract_strided_slice %29 {offsets = [0, 1], sizes = [8, 127], strides = [1, 1]} : vector<8x128xf32> to vector<8x127xf32>
    %63 = vector.extract_strided_slice %29 {offsets = [0, 0], sizes = [8, 1], strides = [1, 1]} : vector<8x128xf32> to vector<8x1xf32>
    %64 = tpu.concatenate %62, %63 in 1 : vector<8x127xf32>, vector<8x1xf32> -> vector<8x128xf32>
    %c5 = arith.constant 5 : index
    %c0_26 = arith.constant 0 : index
    %c0_27 = arith.constant 0 : index
    %65 = vector.load %arg5[%c5, %c0_26, %c0_27] : memref<9x1x128xf32, #tpu.memory_space<vmem>>, vector<1x1x128xf32>
    %66 = vector.shape_cast %65 : vector<1x1x128xf32> to vector<1x128xf32>
    %67 = vector.broadcast %66 : vector<1x128xf32> to vector<8x128xf32>
    %68 = arith.mulf %64, %67 : vector<8x128xf32>
    %69 = vector.extract_strided_slice %29 {offsets = [0, 7], sizes = [8, 121], strides = [1, 1]} : vector<8x128xf32> to vector<8x121xf32>
    %70 = vector.extract_strided_slice %29 {offsets = [0, 0], sizes = [8, 7], strides = [1, 1]} : vector<8x128xf32> to vector<8x7xf32>
    %71 = tpu.concatenate %69, %70 in 1 : vector<8x121xf32>, vector<8x7xf32> -> vector<8x128xf32>
    %c6 = arith.constant 6 : index
    %c0_28 = arith.constant 0 : index
    %c0_29 = arith.constant 0 : index
    %72 = vector.load %arg5[%c6, %c0_28, %c0_29] : memref<9x1x128xf32, #tpu.memory_space<vmem>>, vector<1x1x128xf32>
    %73 = vector.shape_cast %72 : vector<1x1x128xf32> to vector<1x128xf32>
    %74 = vector.broadcast %73 : vector<1x128xf32> to vector<8x128xf32>
    %75 = arith.mulf %71, %74 : vector<8x128xf32>
    %76 = vector.extract_strided_slice %29 {offsets = [0, 8], sizes = [8, 120], strides = [1, 1]} : vector<8x128xf32> to vector<8x120xf32>
    %77 = vector.extract_strided_slice %29 {offsets = [0, 0], sizes = [8, 8], strides = [1, 1]} : vector<8x128xf32> to vector<8x8xf32>
    %78 = tpu.concatenate %76, %77 in 1 : vector<8x120xf32>, vector<8x8xf32> -> vector<8x128xf32>
    %c7 = arith.constant 7 : index
    %c0_30 = arith.constant 0 : index
    %c0_31 = arith.constant 0 : index
    %79 = vector.load %arg5[%c7, %c0_30, %c0_31] : memref<9x1x128xf32, #tpu.memory_space<vmem>>, vector<1x1x128xf32>
    %80 = vector.shape_cast %79 : vector<1x1x128xf32> to vector<1x128xf32>
    %81 = vector.broadcast %80 : vector<1x128xf32> to vector<8x128xf32>
    %82 = arith.mulf %78, %81 : vector<8x128xf32>
    %83 = vector.extract_strided_slice %29 {offsets = [0, 9], sizes = [8, 119], strides = [1, 1]} : vector<8x128xf32> to vector<8x119xf32>
    %84 = vector.extract_strided_slice %29 {offsets = [0, 0], sizes = [8, 9], strides = [1, 1]} : vector<8x128xf32> to vector<8x9xf32>
    %85 = tpu.concatenate %83, %84 in 1 : vector<8x119xf32>, vector<8x9xf32> -> vector<8x128xf32>
    %c8 = arith.constant 8 : index
    %c0_32 = arith.constant 0 : index
    %c0_33 = arith.constant 0 : index
    %86 = vector.load %arg5[%c8, %c0_32, %c0_33] : memref<9x1x128xf32, #tpu.memory_space<vmem>>, vector<1x1x128xf32>
    %87 = vector.shape_cast %86 : vector<1x1x128xf32> to vector<1x128xf32>
    %88 = vector.broadcast %87 : vector<1x128xf32> to vector<8x128xf32>
    %89 = arith.mulf %85, %88 : vector<8x128xf32>
    %90 = tpu.concatenate %36, %43, %50, %57, %61, %68, %75, %82, %89 in 0 : vector<8x128xf32>, vector<8x128xf32>, vector<8x128xf32>, vector<8x128xf32>, vector<8x128xf32>, vector<8x128xf32>, vector<8x128xf32>, vector<8x128xf32>, vector<8x128xf32> -> vector<72x128xf32>
    %91 = arith.truncf %90 : vector<72x128xf32> to vector<72x128xbf16>
    %c0_34 = arith.constant 0 : index
    %c0_35 = arith.constant 0 : index
    %92 = vector.load %arg3[%c0_34, %c0_35] : memref<8x72xbf16, #tpu.memory_space<vmem>>, vector<8x72xbf16>
    %cst_36 = arith.constant dense<0.000000e+00> : vector<8x128xf32>
    %93 = tpu.matmul %92, %91, %cst_36 {dimension_numbers = #tpu.dot_dimension_numbers<[1], [0], [0], [1], [0, 0, 1, 1], [], []>} : vector<8x72xbf16>, vector<72x128xbf16>, vector<8x128xf32> -> vector<8x128xf32>
    %cst_37 = arith.constant dense<0.000000e+00> : vector<8xf32>
    %94 = vector.multi_reduction <add>, %93, %cst_37 [1] : vector<8x128xf32> to vector<8xf32>
    %95 = vector.shape_cast %94 : vector<8xf32> to vector<8x1xf32>
    %96 = arith.mulf %93, %93 : vector<8x128xf32>
    %cst_38 = arith.constant dense<0.000000e+00> : vector<8xf32>
    %97 = vector.multi_reduction <add>, %96, %cst_38 [1] : vector<8x128xf32> to vector<8xf32>
    %98 = vector.shape_cast %97 : vector<8xf32> to vector<8x1xf32>
    %cst_39 = arith.constant 7.812500e-03 : f32
    %99 = vector.broadcast %cst_39 : f32 to vector<8x1xf32>
    %100 = arith.mulf %95, %99 : vector<8x1xf32>
    %cst_40 = arith.constant 7.812500e-03 : f32
    %101 = vector.broadcast %cst_40 : f32 to vector<8x1xf32>
    %102 = arith.mulf %98, %101 : vector<8x1xf32>
    %103 = arith.mulf %100, %100 : vector<8x1xf32>
    %104 = arith.subf %102, %103 : vector<8x1xf32>
    %c1_41 = arith.constant 1 : index
    %c0_42 = arith.constant 0 : index
    %c0_43 = arith.constant 0 : index
    %105 = vector.load %arg6[%c1_41, %c0_42, %c0_43] : memref<3x8x1xf32, #tpu.memory_space<vmem>>, vector<1x8x1xf32>
    %106 = vector.shape_cast %105 : vector<1x8x1xf32> to vector<8x1xf32>
    %cst_44 = arith.constant 9.99999974E-6 : f32
    %107 = vector.broadcast %cst_44 : f32 to vector<8x1xf32>
    %108 = arith.addf %104, %107 : vector<8x1xf32>
    %109 = math.rsqrt %108 : vector<8x1xf32>
    %110 = arith.mulf %106, %109 : vector<8x1xf32>
    %c1_45 = arith.constant 1 : index
    %c0_46 = arith.constant 0 : index
    %c0_47 = arith.constant 0 : index
    %111 = vector.load %arg7[%c1_45, %c0_46, %c0_47] : memref<3x8x1xf32, #tpu.memory_space<vmem>>, vector<1x8x1xf32>
    %112 = vector.shape_cast %111 : vector<1x8x1xf32> to vector<8x1xf32>
    %113 = arith.mulf %100, %110 : vector<8x1xf32>
    %114 = arith.subf %112, %113 : vector<8x1xf32>
    %115 = vector.broadcast %110 : vector<8x1xf32> to vector<8x128xf32>
    %116 = arith.mulf %93, %115 : vector<8x128xf32>
    %117 = vector.broadcast %114 : vector<8x1xf32> to vector<8x128xf32>
    %118 = arith.addf %116, %117 : vector<8x128xf32>
    %cst_48 = arith.constant 0.000000e+00 : f32
    %119 = vector.broadcast %cst_48 : f32 to vector<8x128xf32>
    %120 = arith.maximumf %118, %119 : vector<8x128xf32>
    %c0_49 = arith.constant 0 : index
    %c0_50 = arith.constant 0 : index
    %121 = vector.load %arg4[%c0_49, %c0_50] : memref<8x4xbf16, #tpu.memory_space<vmem>>, vector<8x4xbf16>
    %c0_51 = arith.constant 0 : index
    %c0_52 = arith.constant 0 : index
    %122 = vector.load %arg1[%c0_51, %c0_52] : memref<4x128xbf16, #tpu.memory_space<vmem>>, vector<4x128xbf16>
    %cst_53 = arith.constant dense<0.000000e+00> : vector<8x128xf32>
    %123 = tpu.matmul %121, %122, %cst_53 {dimension_numbers = #tpu.dot_dimension_numbers<[1], [0], [0], [1], [0, 0, 1, 1], [], []>} : vector<8x4xbf16>, vector<4x128xbf16>, vector<8x128xf32> -> vector<8x128xf32>
    %cst_54 = arith.constant dense<0.000000e+00> : vector<8xf32>
    %124 = vector.multi_reduction <add>, %123, %cst_54 [1] : vector<8x128xf32> to vector<8xf32>
    %125 = vector.shape_cast %124 : vector<8xf32> to vector<8x1xf32>
    %126 = arith.mulf %123, %123 : vector<8x128xf32>
    %cst_55 = arith.constant dense<0.000000e+00> : vector<8xf32>
    %127 = vector.multi_reduction <add>, %126, %cst_55 [1] : vector<8x128xf32> to vector<8xf32>
    %128 = vector.shape_cast %127 : vector<8xf32> to vector<8x1xf32>
    %cst_56 = arith.constant 7.812500e-03 : f32
    %129 = vector.broadcast %cst_56 : f32 to vector<8x1xf32>
    %130 = arith.mulf %125, %129 : vector<8x1xf32>
    %cst_57 = arith.constant 7.812500e-03 : f32
    %131 = vector.broadcast %cst_57 : f32 to vector<8x1xf32>
    %132 = arith.mulf %128, %131 : vector<8x1xf32>
    %133 = arith.mulf %130, %130 : vector<8x1xf32>
    %134 = arith.subf %132, %133 : vector<8x1xf32>
    %c2_58 = arith.constant 2 : index
    %c0_59 = arith.constant 0 : index
    %c0_60 = arith.constant 0 : index
    %135 = vector.load %arg6[%c2_58, %c0_59, %c0_60] : memref<3x8x1xf32, #tpu.memory_space<vmem>>, vector<1x8x1xf32>
    %136 = vector.shape_cast %135 : vector<1x8x1xf32> to vector<8x1xf32>
    %cst_61 = arith.constant 9.99999974E-6 : f32
    %137 = vector.broadcast %cst_61 : f32 to vector<8x1xf32>
    %138 = arith.addf %134, %137 : vector<8x1xf32>
    %139 = math.rsqrt %138 : vector<8x1xf32>
    %140 = arith.mulf %136, %139 : vector<8x1xf32>
    %c2_62 = arith.constant 2 : index
    %c0_63 = arith.constant 0 : index
    %c0_64 = arith.constant 0 : index
    %141 = vector.load %arg7[%c2_62, %c0_63, %c0_64] : memref<3x8x1xf32, #tpu.memory_space<vmem>>, vector<1x8x1xf32>
    %142 = vector.shape_cast %141 : vector<1x8x1xf32> to vector<8x1xf32>
    %143 = arith.mulf %130, %140 : vector<8x1xf32>
    %144 = arith.subf %142, %143 : vector<8x1xf32>
    %145 = vector.broadcast %140 : vector<8x1xf32> to vector<8x128xf32>
    %146 = arith.mulf %123, %145 : vector<8x128xf32>
    %147 = vector.broadcast %144 : vector<8x1xf32> to vector<8x128xf32>
    %148 = arith.addf %146, %147 : vector<8x128xf32>
    %cst_65 = arith.constant 0.000000e+00 : f32
    %149 = vector.broadcast %cst_65 : f32 to vector<8x128xf32>
    %150 = arith.maximumf %148, %149 : vector<8x128xf32>
    %151 = arith.addf %120, %150 : vector<8x128xf32>
    %cst_66 = arith.constant 0.000000e+00 : f32
    %152 = vector.broadcast %cst_66 : f32 to vector<8x128xf32>
    %153 = arith.maximumf %151, %152 : vector<8x128xf32>
    %c0_67 = arith.constant 0 : index
    %c0_68 = arith.constant 0 : index
    %154 = vector.load %arg8[%c0_67, %c0_68] : memref<8x128xf32, #tpu.memory_space<vmem>>, vector<8x128xf32>
    tpu.vector_store %arg8[%c0_67, %c0_68], %153 {strides = array<i32>} : memref<8x128xf32, #tpu.memory_space<vmem>>, vector<8x128xf32>,
    return
  }
}

</mosaic_0001>

<llo_original>
// kernel: block_forward.1
$region0: #{block_forward.1}
  #allocation0 [shape = 'u32[]', space=smem, size = 0x4, offset = 0x4, fixed_abs, tag = 'smem constant byte address 0x4 - core index']
  #allocation1 [shape = 'u32[144,128]{1,0:T(1,128)}', space=vmem, size = 0x12000, scoped, tag = 'internal scratch']
  %s0 = inlined_call_operand.vmem [shape: bf16[36,128], index: 0, kind: input, shape index: {}]
  %s1 = inlined_call_operand.vmem [shape: bf16[4,128], index: 1, kind: input, shape index: {}]
  %s2 = inlined_call_operand.vmem [shape: bf16[8,36], index: 2, kind: input, shape index: {}]
  %s3 = inlined_call_operand.vmem [shape: bf16[8,72], index: 3, kind: input, shape index: {}]
  %s4 = inlined_call_operand.vmem [shape: bf16[8,4], index: 4, kind: input, shape index: {}]
  %s5 = inlined_call_operand.vmem [shape: f32[9,1,128], index: 5, kind: input, shape index: {}]
  %s6 = inlined_call_operand.vmem [shape: f32[3,8,1], index: 6, kind: input, shape index: {}]
  %s7 = inlined_call_operand.vmem [shape: f32[3,8,1], index: 7, kind: input, shape index: {}]
  %s8 = inlined_call_operand.vmem [shape: f32[8,128], index: 8, kind: output, shape index: {}]
  %s9 = sld [smem:[#allocation0]]
  $region42: #{block_forward.1} parent=0
    _
  %s11 = ssub.s32 1, %s9
  %s12 = scalar_select 0, %s11, %s9
  // Predicated region
  $region2: #{block_forward.1} parent=0 // pred_check
    _
  $region3: #{block_forward.1} parent=0 // pred_check_branch
    %14 = sbr.rel (0) target = $region5
  $region4: #{block_forward.1} parent=0 // pred_region
    _
  $region5: #{block_forward.1} parent=0 // pred_fallthru
    _
  // Predicated region
  $region6: #{block_forward.1} parent=0 // pred_check
    _
  $region7: #{block_forward.1} parent=0 // pred_check_branch
    %16 = sbr.rel (0) target = $region9
  $region8: #{block_forward.1} parent=0 // pred_region
    _
  $region9: #{block_forward.1} parent=0 // pred_fallthru
    _
  // Predicated region
  $region10: #{block_forward.1} parent=0 // pred_check
    _
  $region11: #{block_forward.1} parent=0 // pred_check_branch
    %18 = sbr.rel (0) target = $region13
  $region12: #{block_forward.1} parent=0 // pred_region
    _
  $region13: #{block_forward.1} parent=0 // pred_fallthru
    _
  // Predicated region
  $region14: #{block_forward.1} parent=0 // pred_check
    _
  $region15: #{block_forward.1} parent=0 // pred_check_branch
    %20 = sbr.rel (0) target = $region17
  $region16: #{block_forward.1} parent=0 // pred_region
    _
  $region17: #{block_forward.1} parent=0 // pred_fallthru
    _
  // Predicated region
  $region18: #{block_forward.1} parent=0 // pred_check
    _
  $region19: #{block_forward.1} parent=0 // pred_check_branch
    %22 = sbr.rel (0) target = $region21
  $region20: #{block_forward.1} parent=0 // pred_region
    _
  $region21: #{block_forward.1} parent=0 // pred_fallthru
    _
  // Predicated region
  $region22: #{block_forward.1} parent=0 // pred_check
    _
  $region23: #{block_forward.1} parent=0 // pred_check_branch
    %24 = sbr.rel (0) target = $region25
  $region24: #{block_forward.1} parent=0 // pred_region
    _
  $region25: #{block_forward.1} parent=0 // pred_fallthru
    _
  // Predicated region
  $region26: #{block_forward.1} parent=0 // pred_check
    _
  $region27: #{block_forward.1} parent=0 // pred_check_branch
    %26 = sbr.rel (0) target = $region29
  $region28: #{block_forward.1} parent=0 // pred_region
    _
  $region29: #{block_forward.1} parent=0 // pred_fallthru
    _
  // Predicated region
  $region30: #{block_forward.1} parent=0 // pred_check
    _
  $region31: #{block_forward.1} parent=0 // pred_check_branch
    %28 = sbr.rel (0) target = $region33
  $region32: #{block_forward.1} parent=0 // pred_region
    _
  $region33: #{block_forward.1} parent=0 // pred_fallthru
    _
  %v30 = vld [vmem:[%s2] sm:$0xf]
  %v31 = vld [vmem:[%s0] sm:$0xf]
  %v32 = vld [vmem:[%s0 + $0x4] sm:$0xf]
  %v33 = vld [vmem:[%s0 + $0x8] sm:$0xf]
  %v34 = vld [vmem:[%s0 + $0xc] sm:$0xf]
  %v35 = vld [vmem:[%s0 + $0x10] sm:$0x3]
  %v41 = vunpack.c.l.b16 %v31
  %v42 = vunpack.c.l.b16 %v32
  %v43 = vunpack.c.l.b16 %v33
  %v44 = vunpack.c.l.b16 %v34
  %v45 = vunpack.c.l.b16 %v35
  %v46 = vpack.c.b16 %v42, %v41
  %v47 = vpack.c.b16 %v44, %v43
  %v48 = vpack.c.b16 %v45, %v45
  %vm51 = vcmask 293888
  %v53 = vsel %vm51, %v30, 0
  %vm55 = vcmask 1041408
  %v57 = vsel %vm55, %v48, 0
  %59 = vmatprep.subr.bf16.mxu0 0
  %60 = vmatpush1.bf16.msra.mxu0 0
  %61 = vmatprep.subr.bf16.mxu0 0
  %62 = vmatpush1.bf16.msra.mxu0 0
  %63 = vmatprep.subr.bf16.mxu0 0
  %64 = vmatpush1.bf16.msra.mxu0 0
  %65 = vmatprep.subr.bf16.mxu0 0
  %66 = vmatpush1.bf16.msra.mxu0 0
  %67 = vmatprep.subr.bf16.mxu0 0
  %68 = vmatpush1.bf16.msra.mxu0 0
  %69 = vmatprep.subr.bf16.mxu0 0
  %70 = vmatpush1.bf16.msra.mxu0 %v57
  %71 = vmatprep.subr.bf16.mxu0 0
  %72 = vmatpush1.bf16.msra.mxu0 %v47
  %73 = vmatprep.subr.bf16.mxu0 0
  %74 = vmatpush1.bf16.msra.mxu0 %v46
  %75 = vmatprep.subr.bf16.mxu0 0
  %76 = vmatpush2.bf16.msra.mxu0 0
  %77 = vmatprep.subr.bf16.mxu0 0
  %78 = vmatpush2.bf16.msra.mxu0 0
  %79 = vmatprep.subr.bf16.mxu0 0
  %80 = vmatpush2.bf16.msra.mxu0 0
  %81 = vmatprep.subr.bf16.mxu0 0
  %82 = vmatpush2.bf16.msra.mxu0 0
  %83 = vmatprep.subr.bf16.mxu0 0
  %84 = vmatpush2.bf16.msra.mxu0 0
  %85 = vmatprep.subr.bf16.mxu0 0
  %86 = vmatpush2.bf16.msra.mxu0 0
  %87 = vmatprep.subr.bf16.mxu0 0
  %88 = vmatpush2.bf16.msra.mxu0 0
  %89 = vmatprep.subr.bf16.mxu0 0
  %90 = vmatpush2.bf16.msra.mxu0 0
  %91 = vmatprep.mubr.bf16.mxu0 0
  %92 = vmatmul.mubr.bf16.gmra.mxu0 %v53
  %v93 = vpop.f32.mrf.mxu0
  %v94 = vadd.f32 0.0, %v93
  %v95 = vpop.f32.mrf.mxu0
  %v96 = vpop.f32.mrf.mxu0
  %v97 = vpop.f32.mrf.mxu0
  %98 = vdwg.mxu0
  %99 = vadd.xlane.f32.xlu0 %v94
  %v100 = vpop.xlane.xlu0 %99
  %v101 = vmul.f32 %v94, %v94
  %102 = vadd.xlane.f32.xlu0 %v101
  %v103 = vpop.xlane.xlu0 %102
  %v104 = vmul.f32 %v100, 0.0078125
  %v105 = vmul.f32 %v103, 0.0078125
  %v106 = vmul.f32 %v104, %v104
  %v107 = vsub.f32 %v105, %v106
  %v108 = vld [vmem:[%s6] sm:$0xff]
  %v109 = vadd.f32 %v107, 1e-05
  %v110 = vrsqrt.pop %v109
  %v111 = vmul.f32 %v108, %v110
  %v112 = vld [vmem:[%s7] sm:$0xff]
  %v113 = vmul.f32 %v104, %v111
  %v114 = vsub.f32 %v112, %v113
  %116 = vset.pattern.permute.xlu0 0
  %117 = vperm.xlu0 %116, %v111
  %v118 = vpop.permute.xlu0 %117
  %v120 = vmul.f32 %v94, %v118
  %122 = vset.pattern.permute.xlu0 0
  %123 = vperm.xlu0 %122, %v114
  %v124 = vpop.permute.xlu0 %123
  %v126 = vadd.f32 %v120, %v124
  %v127 = vmax.f32 %v126, 0.0
  %129 = vrot.lane.b32.xlu0 %v127, 9
  %v130 = vpop.permute.xlu0 %129
  %v132 = vld [vmem:[%s5] sm:$0x1]
  %v134 = vlaneseq
  %v135 = vshrl.u32 %v134, 7
  %v136 = vsub.s32 0, %v135
  %v137 = vrot.slane %v132, %v136
  %v139 = vmul.f32 %v130, %v137
  %140 = vrot.lane.b32.xlu0 %v127, 8
  %v141 = vpop.permute.xlu0 %140
  %s143 = scalar_lea.vmem %s5, 1
  %v144 = vld [vmem:[%s143] sm:$0x1]
  %v146 = vlaneseq
  %v147 = vshrl.u32 %v146, 7
  %v148 = vsub.s32 0, %v147
  %v149 = vrot.slane %v144, %v148
  %v151 = vmul.f32 %v141, %v149
  %152 = vrot.lane.b32.xlu0 %v127, 7
  %v153 = vpop.permute.xlu0 %152
  %s155 = scalar_lea.vmem %s5, 2
  %v156 = vld [vmem:[%s155] sm:$0x1]
  %v158 = vlaneseq
  %v159 = vshrl.u32 %v158, 7
  %v160 = vsub.s32 0, %v159
  %v161 = vrot.slane %v156, %v160
  %v163 = vmul.f32 %v153, %v161
  %164 = vrot.lane.b32.xlu0 %v127, 1
  %v165 = vpop.permute.xlu0 %164
  %s167 = scalar_lea.vmem %s5, 3
  %v168 = vld [vmem:[%s167] sm:$0x1]
  %v170 = vlaneseq
  %v171 = vshrl.u32 %v170, 7
  %v172 = vsub.s32 0, %v171
  %v173 = vrot.slane %v168, %v172
  %v175 = vmul.f32 %v165, %v173
  %s176 = scalar_lea.vmem %s5, 4
  %v177 = vld [vmem:[%s176] sm:$0x1]
  %v179 = vlaneseq
  %v180 = vshrl.u32 %v179, 7
  %v181 = vsub.s32 0, %v180
  %v182 = vrot.slane %v177, %v181
  %v184 = vmul.f32 %v127, %v182
  %185 = vrot.lane.b32.xlu0 %v127, 127
  %v186 = vpop.permute.xlu0 %185
  %s188 = scalar_lea.vmem %s5, 5
  %v189 = vld [vmem:[%s188] sm:$0x1]
  %v191 = vlaneseq
  %v192 = vshrl.u32 %v191, 7
  %v193 = vsub.s32 0, %v192
  %v194 = vrot.slane %v189, %v193
  %v196 = vmul.f32 %v186, %v194
  %197 = vrot.lane.b32.xlu0 %v127, 121
  %v198 = vpop.permute.xlu0 %197
  %s200 = scalar_lea.vmem %s5, 6
  %v201 = vld [vmem:[%s200] sm:$0x1]
  %v203 = vlaneseq
  %v204 = vshrl.u32 %v203, 7
  %v205 = vsub.s32 0, %v204
  %v206 = vrot.slane %v201, %v205
  %v208 = vmul.f32 %v198, %v206
  %209 = vrot.lane.b32.xlu0 %v127, 120
  %v210 = vpop.permute.xlu0 %209
  %s212 = scalar_lea.vmem %s5, 7
  %v213 = vld [vmem:[%s212] sm:$0x1]
  %v215 = vlaneseq
  %v216 = vshrl.u32 %v215, 7
  %v217 = vsub.s32 0, %v216
  %v218 = vrot.slane %v213, %v217
  %v220 = vmul.f32 %v210, %v218
  %221 = vrot.lane.b32.xlu0 %v127, 119
  %v222 = vpop.permute.xlu0 %221
  %s224 = scalar_lea.vmem %s5, 8
  %v225 = vld [vmem:[%s224] sm:$0x1]
  %v227 = vlaneseq
  %v228 = vshrl.u32 %v227, 7
  %v229 = vsub.s32 0, %v228
  %v230 = vrot.slane %v225, %v229
  %v232 = vmul.f32 %v222, %v230
  %v233 = vpack.c.bf16 %v151, %v139
  %v234 = vpack.c.bf16 %v175, %v163
  %v235 = vpack.c.bf16 %v196, %v184
  %v236 = vpack.c.bf16 %v220, %v208
  %v237 = vpack.c.bf16 %v232, %v232
  %v238 = vld [vmem:[%s3] sm:$0xf]
  %vm239 = vcmask 588800
  %v241 = vsel %vm239, %v238, 0
  %vm243 = vcmask 1043456
  %v245 = vsel %vm243, %v237, 0
  %247 = vmatprep.subr.bf16.mxu0 0
  %248 = vmatpush1.bf16.msra.mxu0 0
  %249 = vmatprep.subr.bf16.mxu0 0
  %250 = vmatpush1.bf16.msra.mxu0 0
  %251 = vmatprep.subr.bf16.mxu0 0
  %252 = vmatpush1.bf16.msra.mxu0 0
  %253 = vmatprep.subr.bf16.mxu0 0
  %254 = vmatpush1.bf16.msra.mxu0 %v245
  %255 = vmatprep.subr.bf16.mxu0 0
  %256 = vmatpush1.bf16.msra.mxu0 %v236
  %257 = vmatprep.subr.bf16.mxu0 0
  %258 = vmatpush1.bf16.msra.mxu0 %v235
  %259 = vmatprep.subr.bf16.mxu0 0
  %260 = vmatpush1.bf16.msra.mxu0 %v234
  %261 = vmatprep.subr.bf16.mxu0 0
  %262 = vmatpush1.bf16.msra.mxu0 %v233
  %263 = vmatprep.subr.bf16.mxu0 0
  %264 = vmatpush2.bf16.msra.mxu0 0
  %265 = vmatprep.subr.bf16.mxu0 0
  %266 = vmatpush2.bf16.msra.mxu0 0
  %267 = vmatprep.subr.bf16.mxu0 0
  %268 = vmatpush2.bf16.msra.mxu0 0
  %269 = vmatprep.subr.bf16.mxu0 0
  %270 = vmatpush2.bf16.msra.mxu0 0
  %271 = vmatprep.subr.bf16.mxu0 0
  %272 = vmatpush2.bf16.msra.mxu0 0
  %273 = vmatprep.subr.bf16.mxu0 0
  %274 = vmatpush2.bf16.msra.mxu0 0
  %275 = vmatprep.subr.bf16.mxu0 0
  %276 = vmatpush2.bf16.msra.mxu0 0
  %277 = vmatprep.subr.bf16.mxu0 0
  %278 = vmatpush2.bf16.msra.mxu0 0
  %279 = vmatprep.mubr.bf16.mxu0 0
  %280 = vmatmul.mubr.bf16.gmra.mxu0 %v241
  %v281 = vpop.f32.mrf.mxu0
  %v282 = vadd.f32 0.0, %v281
  %v283 = vpop.f32.mrf.mxu0
  %v284 = vpop.f32.mrf.mxu0
  %v285 = vpop.f32.mrf.mxu0
  %286 = vdwg.mxu0
  %287 = vadd.xlane.f32.xlu0 %v282
  %v288 = vpop.xlane.xlu0 %287
  %v289 = vmul.f32 %v282, %v282
  %290 = vadd.xlane.f32.xlu0 %v289
  %v291 = vpop.xlane.xlu0 %290
  %v292 = vmul.f32 %v288, 0.0078125
  %v293 = vmul.f32 %v291, 0.0078125
  %v294 = vmul.f32 %v292, %v292
  %v295 = vsub.f32 %v293, %v294
  %s296 = scalar_lea.vmem %s6, 8
  %v297 = vld [vmem:[%s296] sm:$0xff]
  %v298 = vadd.f32 %v295, 1e-05
  %v299 = vrsqrt.pop %v298
  %v300 = vmul.f32 %v297, %v299
  %s301 = scalar_lea.vmem %s7, 8
  %v302 = vld [vmem:[%s301] sm:$0xff]
  %v303 = vmul.f32 %v292, %v300
  %v304 = vsub.f32 %v302, %v303
  %306 = vset.pattern.permute.xlu0 0
  %307 = vperm.xlu0 %306, %v300
  %v308 = vpop.permute.xlu0 %307
  %v310 = vmul.f32 %v282, %v308
  %312 = vset.pattern.permute.xlu0 0
  %313 = vperm.xlu0 %312, %v304
  %v314 = vpop.permute.xlu0 %313
  %v316 = vadd.f32 %v310, %v314
  %v317 = vmax.f32 %v316, 0.0
  %v318 = vld [vmem:[%s4] sm:$0xf]
  %v319 = vld [vmem:[%s1] sm:$0x3]
  %vm320 = vcmask 31744
  %v322 = vsel %vm320, %v318, 0
  %v325 = vsel %vm55, %v319, 0
  %327 = vmatprep.subr.bf16.mxu0 0
  %328 = vmatpush1.bf16.msra.mxu0 0
  %329 = vmatprep.subr.bf16.mxu0 0
  %330 = vmatpush1.bf16.msra.mxu0 0
  %331 = vmatprep.subr.bf16.mxu0 0
  %332 = vmatpush1.bf16.msra.mxu0 0
  %333 = vmatprep.subr.bf16.mxu0 0
  %334 = vmatpush1.bf16.msra.mxu0 0
  %335 = vmatprep.subr.bf16.mxu0 0
  %336 = vmatpush1.bf16.msra.mxu0 0
  %337 = vmatprep.subr.bf16.mxu0 0
  %338 = vmatpush1.bf16.msra.mxu0 0
  %339 = vmatprep.subr.bf16.mxu0 0
  %340 = vmatpush1.bf16.msra.mxu0 0
  %341 = vmatprep.subr.bf16.mxu0 0
  %342 = vmatpush1.bf16.msra.mxu0 %v325
  %343 = vmatprep.subr.bf16.mxu0 0
  %344 = vmatpush2.bf16.msra.mxu0 0
  %345 = vmatprep.subr.bf16.mxu0 0
  %346 = vmatpush2.bf16.msra.mxu0 0
  %347 = vmatprep.subr.bf16.mxu0 0
  %348 = vmatpush2.bf16.msra.mxu0 0
  %349 = vmatprep.subr.bf16.mxu0 0
  %350 = vmatpush2.bf16.msra.mxu0 0
  %351 = vmatprep.subr.bf16.mxu0 0
  %352 = vmatpush2.bf16.msra.mxu0 0
  %353 = vmatprep.subr.bf16.mxu0 0
  %354 = vmatpush2.bf16.msra.mxu0 0
  %355 = vmatprep.subr.bf16.mxu0 0
  %356 = vmatpush2.bf16.msra.mxu0 0
  %357 = vmatprep.subr.bf16.mxu0 0
  %358 = vmatpush2.bf16.msra.mxu0 0
  %359 = vmatprep.mubr.bf16.mxu0 0
  %360 = vmatmul.mubr.bf16.gmra.mxu0 %v322
  %v361 = vpop.f32.mrf.mxu0
  %v362 = vadd.f32 0.0, %v361
  %v363 = vpop.f32.mrf.mxu0
  %v364 = vpop.f32.mrf.mxu0
  %v365 = vpop.f32.mrf.mxu0
  %366 = vdwg.mxu0
  %367 = vadd.xlane.f32.xlu0 %v362
  %v368 = vpop.xlane.xlu0 %367
  %v369 = vmul.f32 %v362, %v362
  %370 = vadd.xlane.f32.xlu0 %v369
  %v371 = vpop.xlane.xlu0 %370
  %v372 = vmul.f32 %v368, 0.0078125
  %v373 = vmul.f32 %v371, 0.0078125
  %v374 = vmul.f32 %v372, %v372
  %v375 = vsub.f32 %v373, %v374
  %s376 = scalar_lea.vmem %s6, 16
  %v377 = vld [vmem:[%s376] sm:$0xff]
  %v378 = vadd.f32 %v375, 1e-05
  %v379 = vrsqrt.pop %v378
  %v380 = vmul.f32 %v377, %v379
  %s381 = scalar_lea.vmem %s7, 16
  %v382 = vld [vmem:[%s381] sm:$0xff]
  %v383 = vmul.f32 %v372, %v380
  %v384 = vsub.f32 %v382, %v383
  %386 = vset.pattern.permute.xlu0 0
  %387 = vperm.xlu0 %386, %v380
  %v388 = vpop.permute.xlu0 %387
  %v390 = vmul.f32 %v362, %v388
  %392 = vset.pattern.permute.xlu0 0
  %393 = vperm.xlu0 %392, %v384
  %v394 = vpop.permute.xlu0 %393
  %v396 = vadd.f32 %v390, %v394
  %v397 = vmax.f32 %v396, 0.0
  %v398 = vadd.f32 %v317, %v397
  %v399 = vmax.f32 %v398, 0.0
  %400 = vst [vmem:[%s8] sm:$0xff] %v399
  // Predicated region
  $region34: #{block_forward.1} parent=0 // pred_check
    _
  $region35: #{block_forward.1} parent=0 // pred_check_branch
    %402 = sbr.rel (0) target = $region37
  $region36: #{block_forward.1} parent=0 // pred_region
    _
  $region37: #{block_forward.1} parent=0 // pred_fallthru
    _
  // Predicated region
  $region38: #{block_forward.1} parent=0 // pred_check
    _
  $region39: #{block_forward.1} parent=0 // pred_check_branch
    %404 = sbr.rel (0) target = $region41
  $region40: #{block_forward.1} parent=0 // pred_region
    _
  $region41: #{block_forward.1} parent=0 // pred_fallthru
    _

</llo_original>
